<compile_context>
chip_gen: v7x
topology: tpu7x:2x2x1
jax: 0.10.0
libtpu: 0.0.40
codegen_flags: <defaults>
</compile_context>

<pallas_src>
import math

import jax
import jax.numpy as jnp
from jax.experimental import pallas as pl
from jax.experimental.pallas import tpu as pltpu


def _scale_rows_kernel(x_ref, m_ref, y_ref):
    # (tile_n, W) * (1, W) -> (tile_n, W): pure VPU broadcast-multiply.
    y_ref[...] = (x_ref[...] * m_ref[...]).astype(y_ref.dtype)


def _sublane_pack(dtype):
    # Native sublane packing: 8 rows for 4-byte, 16 for 2-byte, 32 for 1-byte.
    return max(8, 32 // max(1, jnp.dtype(dtype).itemsize))


def _tpu_block_config():
    """(target block bytes, min grid steps) per TPU generation."""
    try:
        kind = jax.devices()[0].device_kind.lower()
    except Exception:
        kind = ""
    if "v7" in kind:
        # 3.2 TB/s HBM: large blocks amortize the ~0.35us/step overhead; also
        # want >= 4 grid steps so both TensorCores get work.
        return 6 << 20, 4
    if "v6" in kind:
        # 4x4 MiB double-buffered tiles fit the 32 MiB scoped-VMEM default.
        return 4 << 20, 1
    # v5e / unknown: stay comfortably under the 16 MiB scoped-VMEM default.
    return 2 << 20, 1


def learnable_mask_forward(x, mask_param, fixed_mask, prune_rate=1.0,
                           target_block_bytes=None):
    """x: (..., D); mask_param, fixed_mask: (D,).

    Returns (y, mask) matching LearnableMask.forward with is_fixed=False,
    random_mask=False.
    """
    orig_shape = x.shape
    D = orig_shape[-1]
    N = int(math.prod(orig_shape[:-1])) if len(orig_shape) > 1 else 1

    # --- grid-invariant mask: tiny D-element op, once, in plain JAX ----------
    scale = float(prune_rate) * float(D)
    mask = (scale
            * jax.nn.softmax(mask_param.astype(jnp.float32), axis=0)
            * fixed_mask.astype(jnp.float32))                     # (D,), f32

    # torch.matmul(x, diag(mask)) promotes to the wider dtype; mirror that.
    out_dtype = jnp.result_type(x.dtype, mask.dtype)

    x2 = x.reshape(N, D)

    # --- lane packing: present a lane-dense (multiple-of-128) last dim -------
    if D % 128 == 0:
        pack, W = 1, D
    else:
        W = (D * 128) // math.gcd(D, 128)            # lcm(D, 128)
        pack = W // D
        if pack > 64:                                 # lcm too wide: skip packing
            pack, W = 1, D                            # (still correct; masked vst)

    n_main = (N // pack) * pack                       # rows the kernel handles
    n_tail = N - n_main                               # <= pack-1 ragged rows

    if n_main == 0:
        # Fewer rows than one packed row: not worth a kernel launch.
        y2 = x2.astype(out_dtype) * mask.astype(out_dtype)
        return y2.reshape(orig_shape), mask

    xp = x2[:n_main].reshape(n_main // pack, W)       # free, row-major reshape
    np_rows = n_main // pack
    mask_packed = jnp.tile(mask, pack).reshape(1, W).astype(out_dtype)

    in_itemsize = jnp.dtype(x.dtype).itemsize
    out_itemsize = jnp.dtype(out_dtype).itemsize
    sub = max(_sublane_pack(x.dtype), _sublane_pack(out_dtype))

    cfg_bytes, min_steps = _tpu_block_config()
    if target_block_bytes is None:
        target_block_bytes = cfg_bytes

    # --- block sizing: target bytes per (larger of in/out) tile --------------
    bytes_per_row = W * max(in_itemsize, out_itemsize)
    rows_per_block = max(sub, (target_block_bytes // bytes_per_row) // sub * sub)

    # Keep the grid long enough to span both TensorCores on v7x.
    if min_steps > 1 and np_rows >= min_steps * sub:
        cap = -(-np_rows // min_steps)                # cdiv(np_rows, min_steps)
        cap = -(-cap // sub) * sub                    # round up to sublane pack
        rows_per_block = min(rows_per_block, cap)

    if np_rows <= rows_per_block:
        tile_n = np_rows                              # single full-array block
    else:
        tile_n = rows_per_block                       # multiple of `sub`

    grid = (pl.cdiv(np_rows, tile_n),)                # partial last block masked

    # Double-buffered in + out tiles (+ resident mask). Only pass an explicit
    # VMEM limit when we would exceed the most conservative scoped default.
    vmem_need = tile_n * W * 2 * (in_itemsize + out_itemsize) + W * out_itemsize
    vmem_limit = int(vmem_need * 1.25) + (1 << 20) if vmem_need > (14 << 20) else None

    yp = pl.pallas_call(
        _scale_rows_kernel,
        out_shape=jax.ShapeDtypeStruct((np_rows, W), out_dtype),
        grid_spec=pltpu.PrefetchScalarGridSpec(
            num_scalar_prefetch=0,
            grid=grid,
            in_specs=[
                pl.BlockSpec((tile_n, W), lambda i: (i, 0)),
                pl.BlockSpec((1, W), lambda i: (0, 0)),
            ],
            out_specs=pl.BlockSpec((tile_n, W), lambda i: (i, 0)),
        ),
        compiler_params=pltpu.CompilerParams(
            dimension_semantics=("parallel",),
            vmem_limit_bytes=vmem_limit),
    )(xp, mask_packed)

    y_main = yp.reshape(n_main, D)

    if n_tail:
        # <= pack-1 ragged tail rows: tiny plain-JAX multiply, no padded copies.
        y_tail = x2[n_main:].astype(out_dtype) * mask.astype(out_dtype)
        y2 = jnp.concatenate([y_main, y_tail], axis=0)
    else:
        y2 = y_main

    return y2.reshape(orig_shape), mask


if __name__ == "__main__":
    # Module config: dim=32, prune_rate=1.0; x of shape (batch=2, seq=8, dim=32)
    B, S, D = 2, 8, 32
    prune_rate = 1.0

    key = jax.random.PRNGKey(0)
    kx, km = jax.random.split(key)
    x = jax.random.normal(kx, (B, S, D), dtype=jnp.float32)

    # nn.Parameter(torch.ones(dim)) would be all-ones; perturb slightly so the
    # softmax is non-trivial but deterministic.
    mask_param = jnp.ones((D,), dtype=jnp.float32) + 0.01 * jax.random.normal(km, (D,))
    fixed_mask = jnp.ones((D,), dtype=jnp.float32)   # self._mask

    y, mask = learnable_mask_forward(x, mask_param, fixed_mask, prune_rate)
    jax.block_until_ready((y, mask))

    # Reference check in plain JAX.
    ref_mask = prune_rate * D * jax.nn.softmax(mask_param, axis=0) * fixed_mask
    ref_y = x * ref_mask  # == x @ diag(ref_mask)
    assert mask.shape == (D,)
    assert y.shape == x.shape
    assert jnp.allclose(mask, ref_mask, atol=1e-5, rtol=1e-5)
    assert jnp.allclose(y, ref_y, atol=1e-5, rtol=1e-5)

    # TODO(synk): fix_mask / make_prune_mask / make_random_prune_mask are
    # host-side parameter mutations (training-time), not part of forward.
    print("KERNEL_OK")
</pallas_src>

<mosaic_0001>
module attributes {stable_mosaic.version = 11 : i64} {
  func.func @_scale_rows_kernel(%arg0: i32, %arg1: memref<4x128xf32, #tpu.memory_space<vmem>>, %arg2: memref<1x128xf32, #tpu.memory_space<vmem>>, %arg3: memref<4x128xf32, #tpu.memory_space<vmem>>) attributes {dimension_semantics = [#tpu.dimension_semantics<parallel>], iteration_bounds = array<i64: 1>, scalar_prefetch = 0 : i64, scratch_operands = 0 : i64, tpu.core_type = #tpu.core_type<tc>, window_params = [{transform_indices = @transform_0, window_bounds = array<i64: 4, 128>}, {pipeline_mode = #tpu.pipeline_mode<synchronous>, transform_indices = @transform_1, window_bounds = array<i64: 1, 128>}, {transform_indices = @transform_2, window_bounds = array<i64: 4, 128>}]} {
    %c0 = arith.constant 0 : index
    %c0_0 = arith.constant 0 : index
    %0 = vector.load %arg1[%c0, %c0_0] : memref<4x128xf32, #tpu.memory_space<vmem>>, vector<4x128xf32>
    %c0_1 = arith.constant 0 : index
    %c0_2 = arith.constant 0 : index
    %1 = vector.load %arg2[%c0_1, %c0_2] : memref<1x128xf32, #tpu.memory_space<vmem>>, vector<1x128xf32>
    %2 = vector.broadcast %1 : vector<1x128xf32> to vector<4x128xf32>
    %3 = arith.mulf %0, %2 : vector<4x128xf32>
    %c0_3 = arith.constant 0 : index
    %c0_4 = arith.constant 0 : index
    %4 = vector.load %arg3[%c0_3, %c0_4] : memref<4x128xf32, #tpu.memory_space<vmem>>, vector<4x128xf32>
    tpu.vector_store %arg3[%c0_3, %c0_4], %3 {strides = array<i32>} : memref<4x128xf32, #tpu.memory_space<vmem>>, vector<4x128xf32>,
    return
  }
  func.func @transform_0(%arg0: i32) -> (i32, i32) {
    %c0_i32 = arith.constant 0 : i32
    %c0_i32_0 = arith.constant 0 : i32
    return %arg0, %c0_i32 : i32, i32
  }
  func.func @transform_1(%arg0: i32) -> (i32, i32) {
    %c0_i32 = arith.constant 0 : i32
    %c0_i32_0 = arith.constant 0 : i32
    %c0_i32_1 = arith.constant 0 : i32
    return %c0_i32, %c0_i32_0 : i32, i32
  }
  func.func @transform_2(%arg0: i32) -> (i32, i32) {
    %c0_i32 = arith.constant 0 : i32
    %c0_i32_0 = arith.constant 0 : i32
    return %arg0, %c0_i32 : i32, i32
  }
}

</mosaic_0001>

<llo_original>
// kernel: tpu_custom_call.1
$region0: #{tpu_custom_call.1}
  #allocation0 [shape = 'u32[]', space=smem, size = 0x4, offset = 0x4, fixed_abs, tag = 'smem constant byte address 0x4 - core index']
  #allocation1 [shape = 'u32[144,128]{1,0:T(1,128)}', space=vmem, size = 0x12000, scoped, tag = 'internal scratch']
  %s0 = inlined_call_operand.hbm [shape: f32[4,128], index: 0, kind: input, shape index: {}]
  %s1 = inlined_call_operand.vmem [shape: f32[1,128], index: 1, kind: input, shape index: {}]
  %s2 = inlined_call_operand.hbm [shape: f32[4,128], index: 2, kind: output, shape index: {}]
  %s3 = sld [smem:[#allocation0]]
  $region22: #{tpu_custom_call.1} parent=0
    _
  %s5 = ssub.s32 1, %s3
  %s6 = scalar_select 0, %s5, %s3
  $region1: #{tpu_custom_call.1} parent=0
    #allocation2 [shape = 'u8[2048]{0}', space=vmem, size = 0x800, scoped, tag = 'input window, operand 0, single buffered']
    #allocation3 [shape = 's32[1]{0}', space=sflag, size = 0x4, scoped, tag = 'scoped memory for tpu_custom_call.1']
    #allocation4 [shape = 's32[1]{0}', space=sflag, size = 0x4, scoped, tag = 'scoped memory for tpu_custom_call.1']
    #allocation5 [shape = 'u8[2048]{0}', space=vmem, size = 0x800, scoped, tag = 'output window, operand 0, single buffered']
    %7 = vsyncpa [#allocation3], 0
    %8 = vsyncpa [#allocation4], 0
    // Predicated region
    $region2: #{tpu_custom_call.1} parent=1 // pred_check
      _
    $region3: #{tpu_custom_call.1} parent=1 // pred_check_branch
      %10 = sbr.rel (0) target = $region5
    $region4: #{tpu_custom_call.1} parent=1 // pred_region
      %s12 = ssub.s32 64, 64
      %13 = vsyncadd [#allocation3], %s12
      %s15 = sshll.u32 [#allocation2], 4
      %s16 = int_to_ptr.vmem [resolvable:$true] %s15
      %18 = dma.hbm_to_vmem [thread:$0]  %s0, 64, %s16, [#allocation3]
    $region5: #{tpu_custom_call.1} parent=1 // pred_fallthru
      _
    // Predicated region
    $region6: #{tpu_custom_call.1} parent=1 // pred_check
      _
    $region7: #{tpu_custom_call.1} parent=1 // pred_check_branch
      %20 = sbr.rel (0) target = $region9
    $region8: #{tpu_custom_call.1} parent=1 // pred_region
      _
    $region9: #{tpu_custom_call.1} parent=1 // pred_fallthru
      _
    // Predicated region
    $region10: #{tpu_custom_call.1} parent=1 // pred_check
      _
    $region11: #{tpu_custom_call.1} parent=1 // pred_check_branch
      %22 = sbr.rel (0) target = $region13
    $region12: #{tpu_custom_call.1} parent=1 // pred_region
      %23 = dma.done [#allocation3], 64
    $region13: #{tpu_custom_call.1} parent=1 // pred_fallthru
      _
    %v24 = vld [vmem:[#allocation2] sm:$0xf]
    %v25 = vld [vmem:[%s1] sm:$0x1]
    %v27 = vlaneseq
    %v28 = vshrl.u32 %v27, 7
    %v29 = vsub.s32 0, %v28
    %v30 = vrot.slane %v25, %v29
    %v32 = vmul.f32 %v24, %v30
    %33 = vst [vmem:[#allocation5] sm:$0xf] %v32
    // Predicated region
    $region14: #{tpu_custom_call.1} parent=1 // pred_check
      _
    $region15: #{tpu_custom_call.1} parent=1 // pred_check_branch
      %35 = sbr.rel (0) target = $region17
    $region16: #{tpu_custom_call.1} parent=1 // pred_region
      %s37 = ssub.s32 64, 64
      %38 = vsyncadd [#allocation4], %s37
      %s40 = sshll.u32 [#allocation5], 4
      %s41 = int_to_ptr.vmem [resolvable:$true] %s40
      %43 = dma.vmem_to_hbm [thread:$0]  %s41, 64, %s2, [#allocation4]
    $region17: #{tpu_custom_call.1} parent=1 // pred_fallthru
      _
    // Predicated region
    $region18: #{tpu_custom_call.1} parent=1 // pred_check
      _
    $region19: #{tpu_custom_call.1} parent=1 // pred_check_branch
      %45 = sbr.rel (0) target = $region21
    $region20: #{tpu_custom_call.1} parent=1 // pred_region
      %46 = dma.done [#allocation4], 64
    $region21: #{tpu_custom_call.1} parent=1 // pred_fallthru
      _
    %47 = vsyncpa [#allocation3], 1
    %48 = vsyncpa [#allocation4], 1

</llo_original>
